<compile_context>
chip_gen: v5e
topology: v5e:2x2
jax: 0.10.0
libtpu: 0.0.40
codegen_flags: <defaults>
</compile_context>

<pallas_src>
import functools

import jax
import jax.numpy as jnp
from jax.experimental import pallas as pl
from jax.experimental.pallas import tpu as pltpu

HEAD_PAD = 128  # padded lane width for the fused-head output (2 + 5 -> 128)


def fused_kernel(x_ref, wf_ref, bf_ref, wh_ref, bh_ref, o_ref):
    # x_ref:  [TB, C*H*W]  f32 (lane-dense minor dim)
    # wf_ref: [C*H*W, Fp]  backbone weight with GAP scale folded in
    # bf_ref: [1, Fp]      backbone bias (zero-padded)
    # wh_ref: [Fp, 128]    fused head weight (cols 0:2 -> y1, 2:7 -> y2)
    # bh_ref: [1, 128]     fused head bias

    # ---- backbone: GAP + FC fused into one MXU matmul, then ReLU ----
    feat = jnp.dot(x_ref[...], wf_ref[...],
                   preferred_element_type=jnp.float32) + bf_ref[...]   # [TB, Fp]
    feat = jnp.maximum(feat, 0.0)

    # ---- fused heads: single [Fp, 128] matmul, lane-dense store ----
    o_ref[...] = (jnp.dot(feat, wh_ref[...],
                          preferred_element_type=jnp.float32)
                  + bh_ref[...]).astype(o_ref.dtype)                   # [TB, 128]


def multi_output_forward(x, params, *, tb=256):
    """x: [B, C, H, W] float32.  Returns (y1 [B,2], y2 [B,5])."""
    B, C, H, W = x.shape
    HW = H * W
    CHW = C * HW
    wf, bf, w1, b1, w2, b2 = params          # wf:[C,F] bf:[1,F] w1:[F,2] w2:[F,5]
    F = wf.shape[1]
    Fp = pl.cdiv(F, 128) * 128               # lane-dense feature width

    # Fold the 1/(H*W) pooling scale + channel->feature projection into one
    # [C*H*W, Fp] weight:  W_big[c*HW + hw, f] = wf[c, f] / HW.
    wf_big = jnp.repeat(wf * (1.0 / HW), HW, axis=0)            # [CHW, F]
    wf_big = jnp.pad(wf_big, ((0, 0), (0, Fp - F)))             # [CHW, Fp]
    bf_p = jnp.pad(bf, ((0, 0), (0, Fp - F)))                   # [1, Fp]

    # Fuse the two heads into one lane-dense, zero-padded [Fp, 128] weight.
    wh = jnp.zeros((Fp, HEAD_PAD), jnp.float32)
    wh = wh.at[:F, 0:2].set(w1).at[:F, 2:7].set(w2)
    bh = jnp.zeros((1, HEAD_PAD), jnp.float32)
    bh = bh.at[:, 0:2].set(b1).at[:, 2:7].set(b2)

    # Lane-dense x: [B, C*H*W] (view of contiguous NCHW, no copy).
    x2 = x.reshape(B, CHW)

    # Batch tile: multiple of 8 (f32 sublane), capped at tb, pad B up to it.
    TB = min(tb, pl.cdiv(B, 8) * 8)
    Bp = pl.cdiv(B, TB) * TB
    if Bp != B:
        x2 = jnp.pad(x2, ((0, Bp - B), (0, 0)))
    grid = (Bp // TB,)

    # Explicit VMEM budget: double-buffered x/out tiles + resident weights.
    x_tile_bytes = TB * CHW * 4
    out_tile_bytes = TB * HEAD_PAD * 4
    w_bytes = 4 * (wf_big.size + bf_p.size + wh.size + bh.size)
    vmem_bytes = 2 * (x_tile_bytes + out_tile_bytes) + w_bytes + (4 << 20)
    vmem_bytes = int(min(max(vmem_bytes, 8 << 20), 32 << 20))

    out = pl.pallas_call(
        fused_kernel,
        out_shape=jax.ShapeDtypeStruct((Bp, HEAD_PAD), jnp.float32),
        grid=grid,
        in_specs=[
            pl.BlockSpec((TB, CHW), lambda b: (b, 0)),         # x: tiled on batch
            pl.BlockSpec((CHW, Fp), lambda b: (0, 0)),         # fused GAP+FC weight
            pl.BlockSpec((1, Fp), lambda b: (0, 0)),           # backbone bias
            pl.BlockSpec((Fp, HEAD_PAD), lambda b: (0, 0)),    # fused head weight
            pl.BlockSpec((1, HEAD_PAD), lambda b: (0, 0)),     # fused head bias
        ],
        out_specs=pl.BlockSpec((TB, HEAD_PAD), lambda b: (b, 0)),
        compiler_params=pltpu.CompilerParams(
            dimension_semantics=("parallel",),
            vmem_limit_bytes=vmem_bytes,
        ),
    )(x2, wf_big, bf_p, wh, bh)

    y1 = out[:B, 0:2]
    y2 = out[:B, 2:7]
    return y1, y2


def init_params(key, in_ch, num_ftrs):
    """Deterministic parameter init (PyTorch Linear convention W:[out,in])."""
    k = jax.random.split(key, 6)
    # backbone fc: in_ch -> num_ftrs
    wf_t = jax.random.normal(k[0], (num_ftrs, in_ch), jnp.float32) * 0.1
    bf = jax.random.normal(k[1], (num_ftrs,), jnp.float32) * 0.1
    # head 1: num_ftrs -> 2
    w1_t = jax.random.normal(k[2], (2, num_ftrs), jnp.float32) * 0.1
    b1 = jax.random.normal(k[3], (2,), jnp.float32) * 0.1
    # head 2: num_ftrs -> 5
    w2_t = jax.random.normal(k[4], (5, num_ftrs), jnp.float32) * 0.1
    b2 = jax.random.normal(k[5], (5,), jnp.float32) * 0.1

    # transpose to [in, out], biases to [1, out]
    return (wf_t.T, bf.reshape(1, -1),
            w1_t.T, b1.reshape(1, -1),
            w2_t.T, b2.reshape(1, -1))


def reference_forward(x, params):
    wf, bf, w1, b1, w2, b2 = params
    gap = jnp.mean(x, axis=(2, 3))
    feat = jnp.maximum(gap @ wf + bf, 0.0)
    return feat @ w1 + b1, feat @ w2 + b2


if __name__ == "__main__":
    key = jax.random.PRNGKey(0)
    kx, kp = jax.random.split(key)

    B, C, H, W = 2, 4, 16, 16
    num_ftrs = 32

    x = jax.random.normal(kx, (B, C, H, W), jnp.float32)
    params = init_params(kp, C, num_ftrs)

    fwd = jax.jit(functools.partial(multi_output_forward, tb=256))
    y1, y2 = fwd(x, params)
    jax.block_until_ready((y1, y2))

    # sanity check against pure-JAX reference
    r1, r2 = reference_forward(x, params)
    assert y1.shape == (B, 2) and y2.shape == (B, 5)
    assert jnp.allclose(y1, r1, atol=5e-5, rtol=1e-4)
    assert jnp.allclose(y2, r2, atol=5e-5, rtol=1e-4)

    print("KERNEL_OK")
</pallas_src>

<mosaic_0001>
module attributes {stable_mosaic.version = 11 : i64} {
  func.func @fused_kernel(%arg0: i32, %arg1: memref<8x1024xf32, #tpu.memory_space<vmem>>, %arg2: memref<1024x128xf32, #tpu.memory_space<vmem>>, %arg3: memref<1x128xf32, #tpu.memory_space<vmem>>, %arg4: memref<128x128xf32, #tpu.memory_space<vmem>>, %arg5: memref<1x128xf32, #tpu.memory_space<vmem>>, %arg6: memref<8x128xf32, #tpu.memory_space<vmem>>) attributes {dimension_semantics = [#tpu.dimension_semantics<parallel>], iteration_bounds = array<i64: 1>, scalar_prefetch = 0 : i64, scratch_operands = 0 : i64, tpu.core_type = #tpu.core_type<tc>, window_params = [{transform_indices = @transform_0, window_bounds = array<i64: 8, 1024>}, {pipeline_mode = #tpu.pipeline_mode<synchronous>, transform_indices = @transform_1, window_bounds = array<i64: 1024, 128>}, {pipeline_mode = #tpu.pipeline_mode<synchronous>, transform_indices = @transform_2, window_bounds = array<i64: 1, 128>}, {pipeline_mode = #tpu.pipeline_mode<synchronous>, transform_indices = @transform_3, window_bounds = array<i64: 128, 128>}, {pipeline_mode = #tpu.pipeline_mode<synchronous>, transform_indices = @transform_4, window_bounds = array<i64: 1, 128>}, {transform_indices = @transform_5, window_bounds = array<i64: 8, 128>}]} {
    %c0 = arith.constant 0 : index
    %c0_0 = arith.constant 0 : index
    %0 = vector.load %arg1[%c0, %c0_0] : memref<8x1024xf32, #tpu.memory_space<vmem>>, vector<8x1024xf32>
    %c0_1 = arith.constant 0 : index
    %c0_2 = arith.constant 0 : index
    %1 = vector.load %arg2[%c0_1, %c0_2] : memref<1024x128xf32, #tpu.memory_space<vmem>>, vector<1024x128xf32>
    %cst = arith.constant dense<0.000000e+00> : vector<8x128xf32>
    %2 = tpu.matmul %0, %1, %cst {dimension_numbers = #tpu.dot_dimension_numbers<[1], [0], [0], [1], [0, 0, 1, 1], [], []>} : vector<8x1024xf32>, vector<1024x128xf32>, vector<8x128xf32> -> vector<8x128xf32>
    %c0_3 = arith.constant 0 : index
    %c0_4 = arith.constant 0 : index
    %3 = vector.load %arg3[%c0_3, %c0_4] : memref<1x128xf32, #tpu.memory_space<vmem>>, vector<1x128xf32>
    %4 = vector.broadcast %3 : vector<1x128xf32> to vector<8x128xf32>
    %5 = arith.addf %2, %4 : vector<8x128xf32>
    %cst_5 = arith.constant 0.000000e+00 : f32
    %6 = vector.broadcast %cst_5 : f32 to vector<8x128xf32>
    %7 = arith.maximumf %5, %6 : vector<8x128xf32>
    %c0_6 = arith.constant 0 : index
    %c0_7 = arith.constant 0 : index
    %8 = vector.load %arg4[%c0_6, %c0_7] : memref<128x128xf32, #tpu.memory_space<vmem>>, vector<128x128xf32>
    %cst_8 = arith.constant dense<0.000000e+00> : vector<8x128xf32>
    %9 = tpu.matmul %7, %8, %cst_8 {dimension_numbers = #tpu.dot_dimension_numbers<[1], [0], [0], [1], [0, 0, 1, 1], [], []>} : vector<8x128xf32>, vector<128x128xf32>, vector<8x128xf32> -> vector<8x128xf32>
    %c0_9 = arith.constant 0 : index
    %c0_10 = arith.constant 0 : index
    %10 = vector.load %arg5[%c0_9, %c0_10] : memref<1x128xf32, #tpu.memory_space<vmem>>, vector<1x128xf32>
    %11 = vector.broadcast %10 : vector<1x128xf32> to vector<8x128xf32>
    %12 = arith.addf %9, %11 : vector<8x128xf32>
    %c0_11 = arith.constant 0 : index
    %c0_12 = arith.constant 0 : index
    %13 = vector.load %arg6[%c0_11, %c0_12] : memref<8x128xf32, #tpu.memory_space<vmem>>, vector<8x128xf32>
    tpu.vector_store %arg6[%c0_11, %c0_12], %12 {strides = array<i32>} : memref<8x128xf32, #tpu.memory_space<vmem>>, vector<8x128xf32>,
    return
  }
  func.func @transform_0(%arg0: i32) -> (i32, i32) {
    %c0_i32 = arith.constant 0 : i32
    %c0_i32_0 = arith.constant 0 : i32
    return %arg0, %c0_i32 : i32, i32
  }
  func.func @transform_1(%arg0: i32) -> (i32, i32) {
    %c0_i32 = arith.constant 0 : i32
    %c0_i32_0 = arith.constant 0 : i32
    %c0_i32_1 = arith.constant 0 : i32
    return %c0_i32, %c0_i32_0 : i32, i32
  }
  func.func @transform_2(%arg0: i32) -> (i32, i32) {
    %c0_i32 = arith.constant 0 : i32
    %c0_i32_0 = arith.constant 0 : i32
    %c0_i32_1 = arith.constant 0 : i32
    return %c0_i32, %c0_i32_0 : i32, i32
  }
  func.func @transform_3(%arg0: i32) -> (i32, i32) {
    %c0_i32 = arith.constant 0 : i32
    %c0_i32_0 = arith.constant 0 : i32
    %c0_i32_1 = arith.constant 0 : i32
    return %c0_i32, %c0_i32_0 : i32, i32
  }
  func.func @transform_4(%arg0: i32) -> (i32, i32) {
    %c0_i32 = arith.constant 0 : i32
    %c0_i32_0 = arith.constant 0 : i32
    %c0_i32_1 = arith.constant 0 : i32
    return %c0_i32, %c0_i32_0 : i32, i32
  }
  func.func @transform_5(%arg0: i32) -> (i32, i32) {
    %c0_i32 = arith.constant 0 : i32
    %c0_i32_0 = arith.constant 0 : i32
    return %arg0, %c0_i32 : i32, i32
  }
}

</mosaic_0001>

<llo_original>
// kernel: multi_output_forward.1
$region0: #{multi_output_forward.1}
  #allocation0 [shape = 'u32[]', space=smem, size = 0x4, offset = 0x4, fixed_abs, tag = 'smem constant byte address 0x4 - core index']
  #allocation1 [shape = 'u32[72,128]{1,0:T(1,128)}', space=vmem, size = 0x9000, scoped, tag = 'internal scratch']
  %s0 = inlined_call_operand.vmem [shape: f32[8,1024], index: 0, kind: input, shape index: {}]
  %s1 = inlined_call_operand.vmem [shape: f32[1024,128], index: 1, kind: input, shape index: {}]
  %s2 = inlined_call_operand.vmem [shape: f32[1,128], index: 2, kind: input, shape index: {}]
  %s3 = inlined_call_operand.vmem [shape: f32[128,128], index: 3, kind: input, shape index: {}]
  %s4 = inlined_call_operand.vmem [shape: f32[1,128], index: 4, kind: input, shape index: {}]
  %s5 = inlined_call_operand.vmem [shape: f32[8,128], index: 5, kind: output, shape index: {}]
  %s6 = sld [smem:[#allocation0]]
  $region30: #{multi_output_forward.1} parent=0
    _
  %s8 = ssub.s32 1, %s6
  %s9 = scalar_select 0, %s8, %s6
  // Predicated region
  $region2: #{multi_output_forward.1} parent=0 // pred_check
    _
  $region3: #{multi_output_forward.1} parent=0 // pred_check_branch
    %11 = sbr.rel (0) target = $region5
  $region4: #{multi_output_forward.1} parent=0 // pred_region
    _
  $region5: #{multi_output_forward.1} parent=0 // pred_fallthru
    _
  // Predicated region
  $region6: #{multi_output_forward.1} parent=0 // pred_check
    _
  $region7: #{multi_output_forward.1} parent=0 // pred_check_branch
    %13 = sbr.rel (0) target = $region9
  $region8: #{multi_output_forward.1} parent=0 // pred_region
    _
  $region9: #{multi_output_forward.1} parent=0 // pred_fallthru
    _
  // Predicated region
  $region10: #{multi_output_forward.1} parent=0 // pred_check
    _
  $region11: #{multi_output_forward.1} parent=0 // pred_check_branch
    %15 = sbr.rel (0) target = $region13
  $region12: #{multi_output_forward.1} parent=0 // pred_region
    _
  $region13: #{multi_output_forward.1} parent=0 // pred_fallthru
    _
  // Predicated region
  $region14: #{multi_output_forward.1} parent=0 // pred_check
    _
  $region15: #{multi_output_forward.1} parent=0 // pred_check_branch
    %17 = sbr.rel (0) target = $region17
  $region16: #{multi_output_forward.1} parent=0 // pred_region
    _
  $region17: #{multi_output_forward.1} parent=0 // pred_fallthru
    _
  // Predicated region
  $region18: #{multi_output_forward.1} parent=0 // pred_check
    _
  $region19: #{multi_output_forward.1} parent=0 // pred_check_branch
    %19 = sbr.rel (0) target = $region21
  $region20: #{multi_output_forward.1} parent=0 // pred_region
    _
  $region21: #{multi_output_forward.1} parent=0 // pred_fallthru
    _
  %v20 = vld [vmem:[%s0] sm:$0xff]
  %v21 = vld [vmem:[%s0 + $0x8] sm:$0xff]
  %v22 = vld [vmem:[%s0 + $0x10] sm:$0xff]
  %v23 = vld [vmem:[%s0 + $0x18] sm:$0xff]
  %v24 = vld [vmem:[%s0 + $0x20] sm:$0xff]
  %v25 = vld [vmem:[%s0 + $0x28] sm:$0xff]
  %v26 = vld [vmem:[%s0 + $0x30] sm:$0xff]
  %v27 = vld [vmem:[%s0 + $0x38] sm:$0xff]
  %v28 = vld [vmem:[%s1] sm:$0xff]
  %v29 = vld [vmem:[%s1 + $0x8] sm:$0xff]
  %v30 = vld [vmem:[%s1 + $0x10] sm:$0xff]
  %v31 = vld [vmem:[%s1 + $0x18] sm:$0xff]
  %v32 = vld [vmem:[%s1 + $0x20] sm:$0xff]
  %v33 = vld [vmem:[%s1 + $0x28] sm:$0xff]
  %v34 = vld [vmem:[%s1 + $0x30] sm:$0xff]
  %v35 = vld [vmem:[%s1 + $0x38] sm:$0xff]
  %v36 = vld [vmem:[%s1 + $0x40] sm:$0xff]
  %v37 = vld [vmem:[%s1 + $0x48] sm:$0xff]
  %v38 = vld [vmem:[%s1 + $0x50] sm:$0xff]
  %v39 = vld [vmem:[%s1 + $0x58] sm:$0xff]
  %v40 = vld [vmem:[%s1 + $0x60] sm:$0xff]
  %v41 = vld [vmem:[%s1 + $0x68] sm:$0xff]
  %v42 = vld [vmem:[%s1 + $0x70] sm:$0xff]
  %v43 = vld [vmem:[%s1 + $0x78] sm:$0xff]
  %v44 = vld [vmem:[%s1 + $0x80] sm:$0xff]
  %v45 = vld [vmem:[%s1 + $0x88] sm:$0xff]
  %v46 = vld [vmem:[%s1 + $0x90] sm:$0xff]
  %v47 = vld [vmem:[%s1 + $0x98] sm:$0xff]
  %v48 = vld [vmem:[%s1 + $0xa0] sm:$0xff]
  %v49 = vld [vmem:[%s1 + $0xa8] sm:$0xff]
  %v50 = vld [vmem:[%s1 + $0xb0] sm:$0xff]
  %v51 = vld [vmem:[%s1 + $0xb8] sm:$0xff]
  %v52 = vld [vmem:[%s1 + $0xc0] sm:$0xff]
  %v53 = vld [vmem:[%s1 + $0xc8] sm:$0xff]
  %v54 = vld [vmem:[%s1 + $0xd0] sm:$0xff]
  %v55 = vld [vmem:[%s1 + $0xd8] sm:$0xff]
  %v56 = vld [vmem:[%s1 + $0xe0] sm:$0xff]
  %v57 = vld [vmem:[%s1 + $0xe8] sm:$0xff]
  %v58 = vld [vmem:[%s1 + $0xf0] sm:$0xff]
  %v59 = vld [vmem:[%s1 + $0xf8] sm:$0xff]
  %v60 = vld [vmem:[%s1 + $0x100] sm:$0xff]
  %v61 = vld [vmem:[%s1 + $0x108] sm:$0xff]
  %v62 = vld [vmem:[%s1 + $0x110] sm:$0xff]
  %v63 = vld [vmem:[%s1 + $0x118] sm:$0xff]
  %v64 = vld [vmem:[%s1 + $0x120] sm:$0xff]
  %v65 = vld [vmem:[%s1 + $0x128] sm:$0xff]
  %v66 = vld [vmem:[%s1 + $0x130] sm:$0xff]
  %v67 = vld [vmem:[%s1 + $0x138] sm:$0xff]
  %v68 = vld [vmem:[%s1 + $0x140] sm:$0xff]
  %v69 = vld [vmem:[%s1 + $0x148] sm:$0xff]
  %v70 = vld [vmem:[%s1 + $0x150] sm:$0xff]
  %v71 = vld [vmem:[%s1 + $0x158] sm:$0xff]
  %v72 = vld [vmem:[%s1 + $0x160] sm:$0xff]
  %v73 = vld [vmem:[%s1 + $0x168] sm:$0xff]
  %v74 = vld [vmem:[%s1 + $0x170] sm:$0xff]
  %v75 = vld [vmem:[%s1 + $0x178] sm:$0xff]
  %v76 = vld [vmem:[%s1 + $0x180] sm:$0xff]
  %v77 = vld [vmem:[%s1 + $0x188] sm:$0xff]
  %v78 = vld [vmem:[%s1 + $0x190] sm:$0xff]
  %v79 = vld [vmem:[%s1 + $0x198] sm:$0xff]
  %v80 = vld [vmem:[%s1 + $0x1a0] sm:$0xff]
  %v81 = vld [vmem:[%s1 + $0x1a8] sm:$0xff]
  %v82 = vld [vmem:[%s1 + $0x1b0] sm:$0xff]
  %v83 = vld [vmem:[%s1 + $0x1b8] sm:$0xff]
  %v84 = vld [vmem:[%s1 + $0x1c0] sm:$0xff]
  %v85 = vld [vmem:[%s1 + $0x1c8] sm:$0xff]
  %v86 = vld [vmem:[%s1 + $0x1d0] sm:$0xff]
  %v87 = vld [vmem:[%s1 + $0x1d8] sm:$0xff]
  %v88 = vld [vmem:[%s1 + $0x1e0] sm:$0xff]
  %v89 = vld [vmem:[%s1 + $0x1e8] sm:$0xff]
  %v90 = vld [vmem:[%s1 + $0x1f0] sm:$0xff]
  %v91 = vld [vmem:[%s1 + $0x1f8] sm:$0xff]
  %v92 = vld [vmem:[%s1 + $0x200] sm:$0xff]
  %v93 = vld [vmem:[%s1 + $0x208] sm:$0xff]
  %v94 = vld [vmem:[%s1 + $0x210] sm:$0xff]
  %v95 = vld [vmem:[%s1 + $0x218] sm:$0xff]
  %v96 = vld [vmem:[%s1 + $0x220] sm:$0xff]
  %v97 = vld [vmem:[%s1 + $0x228] sm:$0xff]
  %v98 = vld [vmem:[%s1 + $0x230] sm:$0xff]
  %v99 = vld [vmem:[%s1 + $0x238] sm:$0xff]
  %v100 = vld [vmem:[%s1 + $0x240] sm:$0xff]
  %v101 = vld [vmem:[%s1 + $0x248] sm:$0xff]
  %v102 = vld [vmem:[%s1 + $0x250] sm:$0xff]
  %v103 = vld [vmem:[%s1 + $0x258] sm:$0xff]
  %v104 = vld [vmem:[%s1 + $0x260] sm:$0xff]
  %v105 = vld [vmem:[%s1 + $0x268] sm:$0xff]
  %v106 = vld [vmem:[%s1 + $0x270] sm:$0xff]
  %v107 = vld [vmem:[%s1 + $0x278] sm:$0xff]
  %v108 = vld [vmem:[%s1 + $0x280] sm:$0xff]
  %v109 = vld [vmem:[%s1 + $0x288] sm:$0xff]
  %v110 = vld [vmem:[%s1 + $0x290] sm:$0xff]
  %v111 = vld [vmem:[%s1 + $0x298] sm:$0xff]
  %v112 = vld [vmem:[%s1 + $0x2a0] sm:$0xff]
  %v113 = vld [vmem:[%s1 + $0x2a8] sm:$0xff]
  %v114 = vld [vmem:[%s1 + $0x2b0] sm:$0xff]
  %v115 = vld [vmem:[%s1 + $0x2b8] sm:$0xff]
  %v116 = vld [vmem:[%s1 + $0x2c0] sm:$0xff]
  %v117 = vld [vmem:[%s1 + $0x2c8] sm:$0xff]
  %v118 = vld [vmem:[%s1 + $0x2d0] sm:$0xff]
  %v119 = vld [vmem:[%s1 + $0x2d8] sm:$0xff]
  %v120 = vld [vmem:[%s1 + $0x2e0] sm:$0xff]
  %v121 = vld [vmem:[%s1 + $0x2e8] sm:$0xff]
  %v122 = vld [vmem:[%s1 + $0x2f0] sm:$0xff]
  %v123 = vld [vmem:[%s1 + $0x2f8] sm:$0xff]
  %v124 = vld [vmem:[%s1 + $0x300] sm:$0xff]
  %v125 = vld [vmem:[%s1 + $0x308] sm:$0xff]
  %v126 = vld [vmem:[%s1 + $0x310] sm:$0xff]
  %v127 = vld [vmem:[%s1 + $0x318] sm:$0xff]
  %v128 = vld [vmem:[%s1 + $0x320] sm:$0xff]
  %v129 = vld [vmem:[%s1 + $0x328] sm:$0xff]
  %v130 = vld [vmem:[%s1 + $0x330] sm:$0xff]
  %v131 = vld [vmem:[%s1 + $0x338] sm:$0xff]
  %v132 = vld [vmem:[%s1 + $0x340] sm:$0xff]
  %v133 = vld [vmem:[%s1 + $0x348] sm:$0xff]
  %v134 = vld [vmem:[%s1 + $0x350] sm:$0xff]
  %v135 = vld [vmem:[%s1 + $0x358] sm:$0xff]
  %v136 = vld [vmem:[%s1 + $0x360] sm:$0xff]
  %v137 = vld [vmem:[%s1 + $0x368] sm:$0xff]
  %v138 = vld [vmem:[%s1 + $0x370] sm:$0xff]
  %v139 = vld [vmem:[%s1 + $0x378] sm:$0xff]
  %v140 = vld [vmem:[%s1 + $0x380] sm:$0xff]
  %v141 = vld [vmem:[%s1 + $0x388] sm:$0xff]
  %v142 = vld [vmem:[%s1 + $0x390] sm:$0xff]
  %v143 = vld [vmem:[%s1 + $0x398] sm:$0xff]
  %v144 = vld [vmem:[%s1 + $0x3a0] sm:$0xff]
  %v145 = vld [vmem:[%s1 + $0x3a8] sm:$0xff]
  %v146 = vld [vmem:[%s1 + $0x3b0] sm:$0xff]
  %v147 = vld [vmem:[%s1 + $0x3b8] sm:$0xff]
  %v148 = vld [vmem:[%s1 + $0x3c0] sm:$0xff]
  %v149 = vld [vmem:[%s1 + $0x3c8] sm:$0xff]
  %v150 = vld [vmem:[%s1 + $0x3d0] sm:$0xff]
  %v151 = vld [vmem:[%s1 + $0x3d8] sm:$0xff]
  %v152 = vld [vmem:[%s1 + $0x3e0] sm:$0xff]
  %v153 = vld [vmem:[%s1 + $0x3e8] sm:$0xff]
  %v154 = vld [vmem:[%s1 + $0x3f0] sm:$0xff]
  %v155 = vld [vmem:[%s1 + $0x3f8] sm:$0xff]
  %v156 = vld [vmem:[%s2] sm:$0x1]
  %v158 = vperm.slane %v156, 0
  %160 = vmatpush.msra.mxu0 %v43
  %161 = vmatpush.msra.mxu0 %v42
  %162 = vmatpush.msra.mxu0 %v41
  %163 = vmatpush.msra.mxu0 %v40
  %164 = vmatpush.msra.mxu0 %v39
  %165 = vmatpush.msra.mxu0 %v38
  %166 = vmatpush.msra.mxu0 %v37
  %167 = vmatpush.msra.mxu0 %v36
  %168 = vmatpush.msra.mxu0 %v35
  %169 = vmatpush.msra.mxu0 %v34
  %170 = vmatpush.msra.mxu0 %v33
  %171 = vmatpush.msra.mxu0 %v32
  %172 = vmatpush.msra.mxu0 %v31
  %173 = vmatpush.msra.mxu0 %v30
  %174 = vmatpush.msra.mxu0 %v29
  %175 = vmatpush.msra.mxu0 %v28
  %176 = vmatmul.f32.gmra.mxu0 %v20
  %v177 = vpop.f32.mrf.mxu0
  %v178 = vadd.f32 %v158, %v177
  %179 = vdwg.mxu0
  %180 = vmatpush.msra.mxu0 %v59
  %181 = vmatpush.msra.mxu0 %v58
  %182 = vmatpush.msra.mxu0 %v57
  %183 = vmatpush.msra.mxu0 %v56
  %184 = vmatpush.msra.mxu0 %v55
  %185 = vmatpush.msra.mxu0 %v54
  %186 = vmatpush.msra.mxu0 %v53
  %187 = vmatpush.msra.mxu0 %v52
  %188 = vmatpush.msra.mxu0 %v51
  %189 = vmatpush.msra.mxu0 %v50
  %190 = vmatpush.msra.mxu0 %v49
  %191 = vmatpush.msra.mxu0 %v48
  %192 = vmatpush.msra.mxu0 %v47
  %193 = vmatpush.msra.mxu0 %v46
  %194 = vmatpush.msra.mxu0 %v45
  %195 = vmatpush.msra.mxu0 %v44
  %196 = vmatmul.f32.gmra.mxu0 %v21
  %v197 = vpop.f32.mrf.mxu0
  %v198 = vadd.f32 %v178, %v197
  %199 = vdwg.mxu0
  %200 = vmatpush.msra.mxu0 %v75
  %201 = vmatpush.msra.mxu0 %v74
  %202 = vmatpush.msra.mxu0 %v73
  %203 = vmatpush.msra.mxu0 %v72
  %204 = vmatpush.msra.mxu0 %v71
  %205 = vmatpush.msra.mxu0 %v70
  %206 = vmatpush.msra.mxu0 %v69
  %207 = vmatpush.msra.mxu0 %v68
  %208 = vmatpush.msra.mxu0 %v67
  %209 = vmatpush.msra.mxu0 %v66
  %210 = vmatpush.msra.mxu0 %v65
  %211 = vmatpush.msra.mxu0 %v64
  %212 = vmatpush.msra.mxu0 %v63
  %213 = vmatpush.msra.mxu0 %v62
  %214 = vmatpush.msra.mxu0 %v61
  %215 = vmatpush.msra.mxu0 %v60
  %216 = vmatmul.f32.gmra.mxu0 %v22
  %v217 = vpop.f32.mrf.mxu0
  %v218 = vadd.f32 %v198, %v217
  %219 = vdwg.mxu0
  %220 = vmatpush.msra.mxu0 %v91
  %221 = vmatpush.msra.mxu0 %v90
  %222 = vmatpush.msra.mxu0 %v89
  %223 = vmatpush.msra.mxu0 %v88
  %224 = vmatpush.msra.mxu0 %v87
  %225 = vmatpush.msra.mxu0 %v86
  %226 = vmatpush.msra.mxu0 %v85
  %227 = vmatpush.msra.mxu0 %v84
  %228 = vmatpush.msra.mxu0 %v83
  %229 = vmatpush.msra.mxu0 %v82
  %230 = vmatpush.msra.mxu0 %v81
  %231 = vmatpush.msra.mxu0 %v80
  %232 = vmatpush.msra.mxu0 %v79
  %233 = vmatpush.msra.mxu0 %v78
  %234 = vmatpush.msra.mxu0 %v77
  %235 = vmatpush.msra.mxu0 %v76
  %236 = vmatmul.f32.gmra.mxu0 %v23
  %v237 = vpop.f32.mrf.mxu0
  %v238 = vadd.f32 %v218, %v237
  %239 = vdwg.mxu0
  %240 = vmatpush.msra.mxu0 %v107
  %241 = vmatpush.msra.mxu0 %v106
  %242 = vmatpush.msra.mxu0 %v105
  %243 = vmatpush.msra.mxu0 %v104
  %244 = vmatpush.msra.mxu0 %v103
  %245 = vmatpush.msra.mxu0 %v102
  %246 = vmatpush.msra.mxu0 %v101
  %247 = vmatpush.msra.mxu0 %v100
  %248 = vmatpush.msra.mxu0 %v99
  %249 = vmatpush.msra.mxu0 %v98
  %250 = vmatpush.msra.mxu0 %v97
  %251 = vmatpush.msra.mxu0 %v96
  %252 = vmatpush.msra.mxu0 %v95
  %253 = vmatpush.msra.mxu0 %v94
  %254 = vmatpush.msra.mxu0 %v93
  %255 = vmatpush.msra.mxu0 %v92
  %256 = vmatmul.f32.gmra.mxu0 %v24
  %v257 = vpop.f32.mrf.mxu0
  %v258 = vadd.f32 %v238, %v257
  %259 = vdwg.mxu0
  %260 = vmatpush.msra.mxu0 %v123
  %261 = vmatpush.msra.mxu0 %v122
  %262 = vmatpush.msra.mxu0 %v121
  %263 = vmatpush.msra.mxu0 %v120
  %264 = vmatpush.msra.mxu0 %v119
  %265 = vmatpush.msra.mxu0 %v118
  %266 = vmatpush.msra.mxu0 %v117
  %267 = vmatpush.msra.mxu0 %v116
  %268 = vmatpush.msra.mxu0 %v115
  %269 = vmatpush.msra.mxu0 %v114
  %270 = vmatpush.msra.mxu0 %v113
  %271 = vmatpush.msra.mxu0 %v112
  %272 = vmatpush.msra.mxu0 %v111
  %273 = vmatpush.msra.mxu0 %v110
  %274 = vmatpush.msra.mxu0 %v109
  %275 = vmatpush.msra.mxu0 %v108
  %276 = vmatmul.f32.gmra.mxu0 %v25
  %v277 = vpop.f32.mrf.mxu0
  %v278 = vadd.f32 %v258, %v277
  %279 = vdwg.mxu0
  %280 = vmatpush.msra.mxu0 %v139
  %281 = vmatpush.msra.mxu0 %v138
  %282 = vmatpush.msra.mxu0 %v137
  %283 = vmatpush.msra.mxu0 %v136
  %284 = vmatpush.msra.mxu0 %v135
  %285 = vmatpush.msra.mxu0 %v134
  %286 = vmatpush.msra.mxu0 %v133
  %287 = vmatpush.msra.mxu0 %v132
  %288 = vmatpush.msra.mxu0 %v131
  %289 = vmatpush.msra.mxu0 %v130
  %290 = vmatpush.msra.mxu0 %v129
  %291 = vmatpush.msra.mxu0 %v128
  %292 = vmatpush.msra.mxu0 %v127
  %293 = vmatpush.msra.mxu0 %v126
  %294 = vmatpush.msra.mxu0 %v125
  %295 = vmatpush.msra.mxu0 %v124
  %296 = vmatmul.f32.gmra.mxu0 %v26
  %v297 = vpop.f32.mrf.mxu0
  %v298 = vadd.f32 %v278, %v297
  %299 = vdwg.mxu0
  %300 = vmatpush.msra.mxu0 %v155
  %301 = vmatpush.msra.mxu0 %v154
  %302 = vmatpush.msra.mxu0 %v153
  %303 = vmatpush.msra.mxu0 %v152
  %304 = vmatpush.msra.mxu0 %v151
  %305 = vmatpush.msra.mxu0 %v150
  %306 = vmatpush.msra.mxu0 %v149
  %307 = vmatpush.msra.mxu0 %v148
  %308 = vmatpush.msra.mxu0 %v147
  %309 = vmatpush.msra.mxu0 %v146
  %310 = vmatpush.msra.mxu0 %v145
  %311 = vmatpush.msra.mxu0 %v144
  %312 = vmatpush.msra.mxu0 %v143
  %313 = vmatpush.msra.mxu0 %v142
  %314 = vmatpush.msra.mxu0 %v141
  %315 = vmatpush.msra.mxu0 %v140
  %316 = vmatmul.f32.gmra.mxu0 %v27
  %v317 = vpop.f32.mrf.mxu0
  %v318 = vadd.f32 %v298, %v317
  %319 = vdwg.mxu0
  %v320 = vmax.f32 %v318, 0.0
  %v321 = vld [vmem:[%s3] sm:$0xff]
  %v322 = vld [vmem:[%s3 + $0x8] sm:$0xff]
  %v323 = vld [vmem:[%s3 + $0x10] sm:$0xff]
  %v324 = vld [vmem:[%s3 + $0x18] sm:$0xff]
  %v325 = vld [vmem:[%s3 + $0x20] sm:$0xff]
  %v326 = vld [vmem:[%s3 + $0x28] sm:$0xff]
  %v327 = vld [vmem:[%s3 + $0x30] sm:$0xff]
  %v328 = vld [vmem:[%s3 + $0x38] sm:$0xff]
  %v329 = vld [vmem:[%s3 + $0x40] sm:$0xff]
  %v330 = vld [vmem:[%s3 + $0x48] sm:$0xff]
  %v331 = vld [vmem:[%s3 + $0x50] sm:$0xff]
  %v332 = vld [vmem:[%s3 + $0x58] sm:$0xff]
  %v333 = vld [vmem:[%s3 + $0x60] sm:$0xff]
  %v334 = vld [vmem:[%s3 + $0x68] sm:$0xff]
  %v335 = vld [vmem:[%s3 + $0x70] sm:$0xff]
  %v336 = vld [vmem:[%s3 + $0x78] sm:$0xff]
  %v337 = vld [vmem:[%s4] sm:$0x1]
  %v339 = vperm.slane %v337, 0
  %341 = vmatpush.msra.mxu0 %v336
  %342 = vmatpush.msra.mxu0 %v335
  %343 = vmatpush.msra.mxu0 %v334
  %344 = vmatpush.msra.mxu0 %v333
  %345 = vmatpush.msra.mxu0 %v332
  %346 = vmatpush.msra.mxu0 %v331
  %347 = vmatpush.msra.mxu0 %v330
  %348 = vmatpush.msra.mxu0 %v329
  %349 = vmatpush.msra.mxu0 %v328
  %350 = vmatpush.msra.mxu0 %v327
  %351 = vmatpush.msra.mxu0 %v326
  %352 = vmatpush.msra.mxu0 %v325
  %353 = vmatpush.msra.mxu0 %v324
  %354 = vmatpush.msra.mxu0 %v323
  %355 = vmatpush.msra.mxu0 %v322
  %356 = vmatpush.msra.mxu0 %v321
  %357 = vmatmul.f32.gmra.mxu0 %v320
  %v358 = vpop.f32.mrf.mxu0
  %v359 = vadd.f32 %v339, %v358
  %360 = vdwg.mxu0
  %361 = vst [vmem:[%s5] sm:$0xff] %v359
  // Predicated region
  $region22: #{multi_output_forward.1} parent=0 // pred_check
    _
  $region23: #{multi_output_forward.1} parent=0 // pred_check_branch
    %363 = sbr.rel (0) target = $region25
  $region24: #{multi_output_forward.1} parent=0 // pred_region
    _
  $region25: #{multi_output_forward.1} parent=0 // pred_fallthru
    _
  // Predicated region
  $region26: #{multi_output_forward.1} parent=0 // pred_check
    _
  $region27: #{multi_output_forward.1} parent=0 // pred_check_branch
    %365 = sbr.rel (0) target = $region29
  $region28: #{multi_output_forward.1} parent=0 // pred_region
    _
  $region29: #{multi_output_forward.1} parent=0 // pred_fallthru
    _

</llo_original>
